<compile_context>
chip_gen: v7x
topology: tpu7x:2x2x1
jax: 0.10.0
libtpu: 0.0.40
codegen_flags: <defaults>
</compile_context>

<pallas_src>
import functools
import math

import jax
import jax.numpy as jnp
from jax import lax
from jax.experimental import pallas as pl
from jax.experimental.pallas import tpu as pltpu

_PI = math.pi
_TILE_B_MAX = 128    # batch tile (multiple of 8)
_TILE_C_MAX = 256    # class tile (multiple of 128 -> lane-dense output stores)


def _round_up(a, b):
    return (a + b - 1) // b * b


def _acos(x):
    # acos built only from ops guaranteed to lower on Mosaic (sqrt/mul/add/where).
    # Abramowitz & Stegun 4.4.46 minimax polynomial (float32-level accuracy).
    a = jnp.abs(x)
    p = jnp.float32(-0.0012624911)
    for c in (0.0066700901, -0.0170881256, 0.0308918810, -0.0501743046,
              0.0889789874, -0.2145988016, 1.5707963050):
        p = p * a + jnp.float32(c)
    r = jnp.sqrt(jnp.maximum(1.0 - a, 0.0)) * p
    return jnp.where(x < 0, jnp.float32(_PI) - r, r)


def qamface_kernel(x_ref, w_ref, lab_ref, out_ref, loss_ref,
                   xn_ref, m_run, s_run, picked,
                   *, m, b_total, c_total):
    b = pl.program_id(0)
    c = pl.program_id(1)
    n_c = pl.num_programs(1)

    tile_b, _d = x_ref.shape
    tile_c = w_ref.shape[1]

    # ---- once per batch tile: normalize x (hoisted) and reset accumulators ----
    @pl.when(c == 0)
    def _():
        x = x_ref[...].astype(jnp.float32)                     # (TB, D)
        ssq = jnp.sum(x * x, axis=1, keepdims=True)
        xn_ref[...] = (x * lax.rsqrt(jnp.maximum(ssq, 1e-24))).astype(xn_ref.dtype)
        m_run[...] = jnp.full(m_run.shape, -jnp.inf, jnp.float32)
        s_run[...] = jnp.zeros(s_run.shape, jnp.float32)
        picked[...] = jnp.zeros(picked.shape, jnp.float32)

    # ---- per class tile: normalize weight columns (rsqrt), bf16 MXU matmul ----
    w = w_ref[...].astype(jnp.float32)                         # (D, TC)
    wsq = jnp.sum(w * w, axis=0, keepdims=True)
    w_n = (w * lax.rsqrt(jnp.maximum(wsq, 1e-24))).astype(jnp.bfloat16)

    cosine = jnp.dot(xn_ref[...], w_n,
                     preferred_element_type=jnp.float32)       # (TB, TC) f32 acc
    cosine = jnp.clip(cosine, -1.0 + 1e-7, 1.0 - 1e-7)
    theta = _acos(cosine)

    col = c * tile_c + lax.broadcasted_iota(jnp.int32, (tile_b, tile_c), 1)
    lab = lab_ref[...]                                         # (TB, 1) int32
    is_label = col == lab
    valid_col = col < c_total

    two_pi = jnp.float32(2.0 * _PI)
    u = two_pi - theta
    others = jnp.float32(0.2) * u * u
    # target - others == 0.2*m^2 - 0.4*m*u  (applied only on the label column)
    delta = jnp.float32(0.2 * m * m) - jnp.float32(0.4 * m) * u
    output = others + jnp.where(is_label, delta, jnp.float32(0.0))
    out_ref[...] = output.astype(out_ref.dtype)

    # ---- online logsumexp across class tiles (padded columns masked out) ----
    om = jnp.where(valid_col, output, jnp.float32(-1e30))
    tile_max = jnp.max(om, axis=1, keepdims=True)
    m_new = jnp.maximum(m_run[...], tile_max)
    s_run[...] = (s_run[...] * jnp.exp(m_run[...] - m_new)
                  + jnp.sum(jnp.exp(om - m_new), axis=1, keepdims=True))
    m_run[...] = m_new
    picked[...] = picked[...] + jnp.sum(
        jnp.where(is_label, output, jnp.float32(0.0)), axis=1, keepdims=True)

    # ---- finalize per-row CE contributions on the last class tile ----
    @pl.when(c == n_c - 1)
    def _():
        lse = m_run[...] + jnp.log(s_run[...])                 # (TB, 1)
        row = b * tile_b + lax.broadcasted_iota(jnp.int32, (tile_b, 1), 0)
        valid_row = row < b_total
        loss_ref[...] = jnp.where(valid_row, lse - picked[...], jnp.float32(0.0))


def qamface_forward(x, weight, label, *, m=0.4,
                    tile_b_max=_TILE_B_MAX, tile_c_max=_TILE_C_MAX):
    """x: (B, n_output) f32, weight: (n_output, n_classes) f32, label: (B,) int."""
    B, D = x.shape
    D2, C = weight.shape
    assert D == D2

    tile_b = min(tile_b_max, _round_up(B, 8))
    tile_c = min(tile_c_max, _round_up(C, 128))
    b_pad = _round_up(B, tile_b)
    c_pad = _round_up(C, tile_c)
    n_bt = b_pad // tile_b
    n_ct = c_pad // tile_c

    x_p = jnp.pad(x.astype(jnp.float32), ((0, b_pad - B), (0, 0)))
    w_p = jnp.pad(weight.astype(jnp.float32), ((0, 0), (0, c_pad - C)))
    lab_p = jnp.pad(label.astype(jnp.int32).reshape(B, 1), ((0, b_pad - B), (0, 0)))

    kernel = functools.partial(qamface_kernel, m=float(m), b_total=B, c_total=C)

    out_p, loss_rows = pl.pallas_call(
        kernel,
        out_shape=(jax.ShapeDtypeStruct((b_pad, c_pad), jnp.float32),
                   jax.ShapeDtypeStruct((b_pad, 1), jnp.float32)),
        grid_spec=pltpu.PrefetchScalarGridSpec(
            num_scalar_prefetch=0,
            grid=(n_bt, n_ct),
            in_specs=[
                pl.BlockSpec((tile_b, D), lambda b, c: (b, 0)),      # x (resident over c)
                pl.BlockSpec((D, tile_c), lambda b, c: (0, c)),      # weight stream
                pl.BlockSpec((tile_b, 1), lambda b, c: (b, 0)),      # labels
            ],
            out_specs=(
                pl.BlockSpec((tile_b, tile_c), lambda b, c: (b, c)),  # logits
                pl.BlockSpec((tile_b, 1), lambda b, c: (b, 0)),       # per-row loss
            ),
            scratch_shapes=[
                pltpu.VMEM((tile_b, D), jnp.bfloat16),   # normalized x (hoisted)
                pltpu.VMEM((tile_b, 1), jnp.float32),    # running max
                pltpu.VMEM((tile_b, 1), jnp.float32),    # running sum(exp)
                pltpu.VMEM((tile_b, 1), jnp.float32),    # picked logit
            ],
        ),
        compiler_params=pltpu.CompilerParams(
            dimension_semantics=("parallel", "arbitrary")),
    )(x_p, w_p, lab_p)

    output = out_p[:B, :C]
    loss = jnp.sum(loss_rows) / jnp.float32(B)   # cross_entropy, reduction='mean'
    return output, loss


def init_qamface_weight(key, n_output, n_classes):
    # xavier_uniform_ on a (n_output, n_classes) tensor
    bound = math.sqrt(6.0 / (n_output + n_classes))
    w = jax.random.uniform(key, (n_output, n_classes), jnp.float32, -bound, bound)
    # weight.data.renorm_(2, 1, 1e-05).mul_(100000.0): clamp each column's L2
    # norm to <= 1e-5, then scale by 1e5.
    col_norm = jnp.sqrt(jnp.sum(w * w, axis=0, keepdims=True))
    scale = jnp.where(col_norm > 1e-5, 1e-5 / (col_norm + 1e-7), 1.0)
    return w * scale * 1e5


if __name__ == "__main__":
    key = jax.random.PRNGKey(0)
    kx, kw, kl = jax.random.split(key, 3)

    # Small demo shapes: batch=16, n_output=64, n_classes=1000
    # (1000 classes -> 4 class tiles of 256: exercises the online-LSE path).
    B, D, C = 16, 64, 1000
    x = jax.random.normal(kx, (B, D), jnp.float32)
    weight = init_qamface_weight(kw, D, C)
    label = jax.random.randint(kl, (B,), 0, C, jnp.int32)

    output, loss = qamface_forward(x, weight, label, m=0.4)
    jax.block_until_ready((output, loss))
    print("KERNEL_OK")
</pallas_src>

<mosaic_0001>
module attributes {stable_mosaic.version = 11 : i64} {
  func.func @qamface_kernel(%arg0: i32, %arg1: i32, %arg2: memref<16x64xf32, #tpu.memory_space<vmem>>, %arg3: memref<64x256xf32, #tpu.memory_space<vmem>>, %arg4: memref<16x1xi32, #tpu.memory_space<vmem>>, %arg5: memref<16x256xf32, #tpu.memory_space<vmem>>, %arg6: memref<16x1xf32, #tpu.memory_space<vmem>>, %arg7: memref<16x64xbf16, #tpu.memory_space<vmem>>, %arg8: memref<16x1xf32, #tpu.memory_space<vmem>>, %arg9: memref<16x1xf32, #tpu.memory_space<vmem>>, %arg10: memref<16x1xf32, #tpu.memory_space<vmem>>) attributes {dimension_semantics = [#tpu.dimension_semantics<parallel>, #tpu.dimension_semantics<arbitrary>], iteration_bounds = array<i64: 1, 4>, scalar_prefetch = 0 : i64, scratch_operands = 4 : i64, tpu.core_type = #tpu.core_type<tc>, window_params = [{transform_indices = @transform_0, window_bounds = array<i64: 16, 64>}, {transform_indices = @transform_1, window_bounds = array<i64: 64, 256>}, {transform_indices = @transform_2, window_bounds = array<i64: 16, 1>}, {transform_indices = @transform_3, window_bounds = array<i64: 16, 256>}, {transform_indices = @transform_4, window_bounds = array<i64: 16, 1>}]} {
    %c0_i32 = arith.constant 0 : i32
    %0 = arith.cmpi eq, %arg1, %c0_i32 : i32
    %1 = arith.extui %0 : i1 to i32
    %c0_i32_0 = arith.constant 0 : i32
    %2 = arith.cmpi ne, %1, %c0_i32_0 : i32
    scf.if %2 {
      %c0_49 = arith.constant 0 : index
      %c0_50 = arith.constant 0 : index
      %104 = vector.load %arg2[%c0_49, %c0_50] : memref<16x64xf32, #tpu.memory_space<vmem>>, vector<16x64xf32>
      %105 = arith.mulf %104, %104 : vector<16x64xf32>
      %cst_51 = arith.constant dense<0.000000e+00> : vector<16xf32>
      %106 = vector.multi_reduction <add>, %105, %cst_51 [1] : vector<16x64xf32> to vector<16xf32>
      %107 = vector.shape_cast %106 : vector<16xf32> to vector<16x1xf32>
      %cst_52 = arith.constant 1.000000e-24 : f32
      %108 = vector.broadcast %cst_52 : f32 to vector<16x1xf32>
      %109 = arith.maximumf %107, %108 : vector<16x1xf32>
      %110 = math.rsqrt %109 : vector<16x1xf32>
      %111 = vector.broadcast %110 : vector<16x1xf32> to vector<16x64xf32>
      %112 = arith.mulf %104, %111 : vector<16x64xf32>
      %113 = arith.truncf %112 : vector<16x64xf32> to vector<16x64xbf16>
      %c0_53 = arith.constant 0 : index
      %c0_54 = arith.constant 0 : index
      %114 = vector.load %arg7[%c0_53, %c0_54] : memref<16x64xbf16, #tpu.memory_space<vmem>>, vector<16x64xbf16>
      tpu.vector_store %arg7[%c0_53, %c0_54], %113 {strides = array<i32>} : memref<16x64xbf16, #tpu.memory_space<vmem>>, vector<16x64xbf16>,
      %cst_55 = arith.constant 0xFF800000 : f32
      %115 = vector.broadcast %cst_55 : f32 to vector<16x1xf32>
      %c0_56 = arith.constant 0 : index
      %c0_57 = arith.constant 0 : index
      %116 = vector.load %arg8[%c0_56, %c0_57] : memref<16x1xf32, #tpu.memory_space<vmem>>, vector<16x1xf32>
      tpu.vector_store %arg8[%c0_56, %c0_57], %115 {strides = array<i32>} : memref<16x1xf32, #tpu.memory_space<vmem>>, vector<16x1xf32>,
      %cst_58 = arith.constant 0.000000e+00 : f32
      %117 = vector.broadcast %cst_58 : f32 to vector<16x1xf32>
      %c0_59 = arith.constant 0 : index
      %c0_60 = arith.constant 0 : index
      %118 = vector.load %arg9[%c0_59, %c0_60] : memref<16x1xf32, #tpu.memory_space<vmem>>, vector<16x1xf32>
      tpu.vector_store %arg9[%c0_59, %c0_60], %117 {strides = array<i32>} : memref<16x1xf32, #tpu.memory_space<vmem>>, vector<16x1xf32>,
      %cst_61 = arith.constant 0.000000e+00 : f32
      %119 = vector.broadcast %cst_61 : f32 to vector<16x1xf32>
      %c0_62 = arith.constant 0 : index
      %c0_63 = arith.constant 0 : index
      %120 = vector.load %arg10[%c0_62, %c0_63] : memref<16x1xf32, #tpu.memory_space<vmem>>, vector<16x1xf32>
      tpu.vector_store %arg10[%c0_62, %c0_63], %119 {strides = array<i32>} : memref<16x1xf32, #tpu.memory_space<vmem>>, vector<16x1xf32>,
    } else {
    }
    %c0 = arith.constant 0 : index
    %c0_1 = arith.constant 0 : index
    %3 = vector.load %arg3[%c0, %c0_1] : memref<64x256xf32, #tpu.memory_space<vmem>>, vector<64x256xf32>
    %4 = arith.mulf %3, %3 : vector<64x256xf32>
    %cst = arith.constant dense<0.000000e+00> : vector<256xf32>
    %5 = vector.multi_reduction <add>, %4, %cst [0] : vector<64x256xf32> to vector<256xf32>
    %6 = vector.shape_cast %5 : vector<256xf32> to vector<1x256xf32>
    %cst_2 = arith.constant 1.000000e-24 : f32
    %7 = vector.broadcast %cst_2 : f32 to vector<1x256xf32>
    %8 = arith.maximumf %6, %7 : vector<1x256xf32>
    %9 = math.rsqrt %8 : vector<1x256xf32>
    %10 = vector.broadcast %9 : vector<1x256xf32> to vector<64x256xf32>
    %11 = arith.mulf %3, %10 : vector<64x256xf32>
    %12 = arith.truncf %11 : vector<64x256xf32> to vector<64x256xbf16>
    %c0_3 = arith.constant 0 : index
    %c0_4 = arith.constant 0 : index
    %13 = vector.load %arg7[%c0_3, %c0_4] : memref<16x64xbf16, #tpu.memory_space<vmem>>, vector<16x64xbf16>
    %cst_5 = arith.constant dense<0.000000e+00> : vector<16x256xf32>
    %14 = tpu.matmul %13, %12, %cst_5 {dimension_numbers = #tpu.dot_dimension_numbers<[1], [0], [0], [1], [0, 0, 1, 1], [], []>} : vector<16x64xbf16>, vector<64x256xbf16>, vector<16x256xf32> -> vector<16x256xf32>
    %cst_6 = arith.constant -0.99999988 : f32
    %cst_7 = arith.constant 0.99999988 : f32
    %15 = vector.broadcast %cst_6 : f32 to vector<16x256xf32>
    %16 = arith.maximumf %15, %14 : vector<16x256xf32>
    %17 = vector.broadcast %cst_7 : f32 to vector<16x256xf32>
    %18 = arith.minimumf %17, %16 : vector<16x256xf32>
    %19 = math.absf %18 : vector<16x256xf32>
    %cst_8 = arith.constant -0.0012624911 : f32
    %20 = vector.broadcast %cst_8 : f32 to vector<16x256xf32>
    %21 = arith.mulf %20, %19 : vector<16x256xf32>
    %cst_9 = arith.constant 6.670090e-03 : f32
    %22 = vector.broadcast %cst_9 : f32 to vector<16x256xf32>
    %23 = arith.addf %21, %22 : vector<16x256xf32>
    %24 = arith.mulf %23, %19 : vector<16x256xf32>
    %cst_10 = arith.constant -0.0170881264 : f32
    %25 = vector.broadcast %cst_10 : f32 to vector<16x256xf32>
    %26 = arith.addf %24, %25 : vector<16x256xf32>
    %27 = arith.mulf %26, %19 : vector<16x256xf32>
    %cst_11 = arith.constant 0.0308918804 : f32
    %28 = vector.broadcast %cst_11 : f32 to vector<16x256xf32>
    %29 = arith.addf %27, %28 : vector<16x256xf32>
    %30 = arith.mulf %29, %19 : vector<16x256xf32>
    %cst_12 = arith.constant -0.0501743034 : f32
    %31 = vector.broadcast %cst_12 : f32 to vector<16x256xf32>
    %32 = arith.addf %30, %31 : vector<16x256xf32>
    %33 = arith.mulf %32, %19 : vector<16x256xf32>
    %cst_13 = arith.constant 0.0889789909 : f32
    %34 = vector.broadcast %cst_13 : f32 to vector<16x256xf32>
    %35 = arith.addf %33, %34 : vector<16x256xf32>
    %36 = arith.mulf %35, %19 : vector<16x256xf32>
    %cst_14 = arith.constant -0.214598805 : f32
    %37 = vector.broadcast %cst_14 : f32 to vector<16x256xf32>
    %38 = arith.addf %36, %37 : vector<16x256xf32>
    %39 = arith.mulf %38, %19 : vector<16x256xf32>
    %cst_15 = arith.constant 1.57079625 : f32
    %40 = vector.broadcast %cst_15 : f32 to vector<16x256xf32>
    %41 = arith.addf %39, %40 : vector<16x256xf32>
    %cst_16 = arith.constant 1.000000e+00 : f32
    %42 = vector.broadcast %cst_16 : f32 to vector<16x256xf32>
    %43 = arith.subf %42, %19 : vector<16x256xf32>
    %cst_17 = arith.constant 0.000000e+00 : f32
    %44 = vector.broadcast %cst_17 : f32 to vector<16x256xf32>
    %45 = arith.maximumf %43, %44 : vector<16x256xf32>
    %46 = math.sqrt %45 : vector<16x256xf32>
    %47 = arith.mulf %46, %41 : vector<16x256xf32>
    %cst_18 = arith.constant 0.000000e+00 : f32
    %48 = vector.broadcast %cst_18 : f32 to vector<16x256xf32>
    %49 = arith.cmpf olt, %18, %48 : vector<16x256xf32>
    %cst_19 = arith.constant 3.14159274 : f32
    %50 = vector.broadcast %cst_19 : f32 to vector<16x256xf32>
    %51 = arith.subf %50, %47 : vector<16x256xf32>
    %52 = arith.select %49, %51, %47 : vector<16x256xi1>, vector<16x256xf32>
    %c256_i32 = arith.constant 256 : i32
    %53 = arith.muli %arg1, %c256_i32 : i32
    %54 = tpu.iota {dimensions = array<i32: 1>} : vector<16x256xi32>
    %55 = vector.broadcast %53 : i32 to vector<16x256xi32>
    %56 = arith.addi %55, %54 : vector<16x256xi32>
    %c0_20 = arith.constant 0 : index
    %c0_21 = arith.constant 0 : index
    %57 = vector.load %arg4[%c0_20, %c0_21] : memref<16x1xi32, #tpu.memory_space<vmem>>, vector<16x1xi32>
    %58 = vector.broadcast %57 : vector<16x1xi32> to vector<16x256xi32>
    %59 = arith.cmpi eq, %56, %58 : vector<16x256xi32>
    %c1000_i32 = arith.constant 1000 : i32
    %60 = vector.broadcast %c1000_i32 : i32 to vector<16x256xi32>
    %61 = arith.cmpi slt, %56, %60 : vector<16x256xi32>
    %cst_22 = arith.constant 6.28318548 : f32
    %62 = vector.broadcast %cst_22 : f32 to vector<16x256xf32>
    %63 = arith.subf %62, %52 : vector<16x256xf32>
    %cst_23 = arith.constant 2.000000e-01 : f32
    %64 = vector.broadcast %cst_23 : f32 to vector<16x256xf32>
    %65 = arith.mulf %64, %63 : vector<16x256xf32>
    %66 = arith.mulf %65, %63 : vector<16x256xf32>
    %cst_24 = arith.constant 1.600000e-01 : f32
    %67 = vector.broadcast %cst_24 : f32 to vector<16x256xf32>
    %68 = arith.mulf %67, %63 : vector<16x256xf32>
    %cst_25 = arith.constant 3.200000e-02 : f32
    %69 = vector.broadcast %cst_25 : f32 to vector<16x256xf32>
    %70 = arith.subf %69, %68 : vector<16x256xf32>
    %cst_26 = arith.constant 0.000000e+00 : f32
    %71 = vector.broadcast %cst_26 : f32 to vector<16x256xf32>
    %72 = arith.select %59, %70, %71 : vector<16x256xi1>, vector<16x256xf32>
    %73 = arith.addf %66, %72 : vector<16x256xf32>
    %c0_27 = arith.constant 0 : index
    %c0_28 = arith.constant 0 : index
    %74 = vector.load %arg5[%c0_27, %c0_28] : memref<16x256xf32, #tpu.memory_space<vmem>>, vector<16x256xf32>
    tpu.vector_store %arg5[%c0_27, %c0_28], %73 {strides = array<i32>} : memref<16x256xf32, #tpu.memory_space<vmem>>, vector<16x256xf32>,
    %cst_29 = arith.constant -1.000000e+30 : f32
    %75 = vector.broadcast %cst_29 : f32 to vector<16x256xf32>
    %76 = arith.select %61, %73, %75 : vector<16x256xi1>, vector<16x256xf32>
    %cst_30 = arith.constant dense<0xFF800000> : vector<16xf32>
    %77 = vector.multi_reduction <maximumf>, %76, %cst_30 [1] : vector<16x256xf32> to vector<16xf32>
    %78 = vector.shape_cast %77 : vector<16xf32> to vector<16x1xf32>
    %c0_31 = arith.constant 0 : index
    %c0_32 = arith.constant 0 : index
    %79 = vector.load %arg8[%c0_31, %c0_32] : memref<16x1xf32, #tpu.memory_space<vmem>>, vector<16x1xf32>
    %80 = arith.maximumf %79, %78 : vector<16x1xf32>
    %c0_33 = arith.constant 0 : index
    %c0_34 = arith.constant 0 : index
    %81 = vector.load %arg9[%c0_33, %c0_34] : memref<16x1xf32, #tpu.memory_space<vmem>>, vector<16x1xf32>
    %c0_35 = arith.constant 0 : index
    %c0_36 = arith.constant 0 : index
    %82 = vector.load %arg8[%c0_35, %c0_36] : memref<16x1xf32, #tpu.memory_space<vmem>>, vector<16x1xf32>
    %83 = arith.subf %82, %80 : vector<16x1xf32>
    %84 = math.exp %83 : vector<16x1xf32>
    %85 = arith.mulf %81, %84 : vector<16x1xf32>
    %86 = vector.broadcast %80 : vector<16x1xf32> to vector<16x256xf32>
    %87 = arith.subf %76, %86 : vector<16x256xf32>
    %88 = math.exp %87 : vector<16x256xf32>
    %cst_37 = arith.constant dense<0.000000e+00> : vector<16xf32>
    %89 = vector.multi_reduction <add>, %88, %cst_37 [1] : vector<16x256xf32> to vector<16xf32>
    %90 = vector.shape_cast %89 : vector<16xf32> to vector<16x1xf32>
    %91 = arith.addf %85, %90 : vector<16x1xf32>
    %c0_38 = arith.constant 0 : index
    %c0_39 = arith.constant 0 : index
    %92 = vector.load %arg9[%c0_38, %c0_39] : memref<16x1xf32, #tpu.memory_space<vmem>>, vector<16x1xf32>
    tpu.vector_store %arg9[%c0_38, %c0_39], %91 {strides = array<i32>} : memref<16x1xf32, #tpu.memory_space<vmem>>, vector<16x1xf32>,
    %c0_40 = arith.constant 0 : index
    %c0_41 = arith.constant 0 : index
    %93 = vector.load %arg8[%c0_40, %c0_41] : memref<16x1xf32, #tpu.memory_space<vmem>>, vector<16x1xf32>
    tpu.vector_store %arg8[%c0_40, %c0_41], %80 {strides = array<i32>} : memref<16x1xf32, #tpu.memory_space<vmem>>, vector<16x1xf32>,
    %c0_42 = arith.constant 0 : index
    %c0_43 = arith.constant 0 : index
    %94 = vector.load %arg10[%c0_42, %c0_43] : memref<16x1xf32, #tpu.memory_space<vmem>>, vector<16x1xf32>
    %cst_44 = arith.constant 0.000000e+00 : f32
    %95 = vector.broadcast %cst_44 : f32 to vector<16x256xf32>
    %96 = arith.select %59, %73, %95 : vector<16x256xi1>, vector<16x256xf32>
    %cst_45 = arith.constant dense<0.000000e+00> : vector<16xf32>
    %97 = vector.multi_reduction <add>, %96, %cst_45 [1] : vector<16x256xf32> to vector<16xf32>
    %98 = vector.shape_cast %97 : vector<16xf32> to vector<16x1xf32>
    %99 = arith.addf %94, %98 : vector<16x1xf32>
    %c0_46 = arith.constant 0 : index
    %c0_47 = arith.constant 0 : index
    %100 = vector.load %arg10[%c0_46, %c0_47] : memref<16x1xf32, #tpu.memory_space<vmem>>, vector<16x1xf32>
    tpu.vector_store %arg10[%c0_46, %c0_47], %99 {strides = array<i32>} : memref<16x1xf32, #tpu.memory_space<vmem>>, vector<16x1xf32>,
    %c3_i32 = arith.constant 3 : i32
    %101 = arith.cmpi eq, %arg1, %c3_i32 : i32
    %102 = arith.extui %101 : i1 to i32
    %c0_i32_48 = arith.constant 0 : i32
    %103 = arith.cmpi ne, %102, %c0_i32_48 : i32
    scf.if %103 {
      %c0_49 = arith.constant 0 : index
      %c0_50 = arith.constant 0 : index
      %104 = vector.load %arg8[%c0_49, %c0_50] : memref<16x1xf32, #tpu.memory_space<vmem>>, vector<16x1xf32>
      %c0_51 = arith.constant 0 : index
      %c0_52 = arith.constant 0 : index
      %105 = vector.load %arg9[%c0_51, %c0_52] : memref<16x1xf32, #tpu.memory_space<vmem>>, vector<16x1xf32>
      %106 = math.log %105 : vector<16x1xf32>
      %107 = arith.addf %104, %106 : vector<16x1xf32>
      %c16_i32 = arith.constant 16 : i32
      %108 = arith.muli %arg0, %c16_i32 : i32
      %109 = tpu.iota {dimensions = array<i32: 0>} : vector<16x1xi32>
      %110 = vector.broadcast %108 : i32 to vector<16x1xi32>
      %111 = arith.addi %110, %109 : vector<16x1xi32>
      %c16_i32_53 = arith.constant 16 : i32
      %112 = vector.broadcast %c16_i32_53 : i32 to vector<16x1xi32>
      %113 = arith.cmpi slt, %111, %112 : vector<16x1xi32>
      %c0_54 = arith.constant 0 : index
      %c0_55 = arith.constant 0 : index
      %114 = vector.load %arg10[%c0_54, %c0_55] : memref<16x1xf32, #tpu.memory_space<vmem>>, vector<16x1xf32>
      %115 = arith.subf %107, %114 : vector<16x1xf32>
      %cst_56 = arith.constant 0.000000e+00 : f32
      %116 = vector.broadcast %cst_56 : f32 to vector<16x1xf32>
      %117 = arith.select %113, %115, %116 : vector<16x1xi1>, vector<16x1xf32>
      %c0_57 = arith.constant 0 : index
      %c0_58 = arith.constant 0 : index
      %118 = vector.load %arg6[%c0_57, %c0_58] : memref<16x1xf32, #tpu.memory_space<vmem>>, vector<16x1xf32>
      tpu.vector_store %arg6[%c0_57, %c0_58], %117 {strides = array<i32>} : memref<16x1xf32, #tpu.memory_space<vmem>>, vector<16x1xf32>,
    } else {
    }
    return
  }
  func.func @transform_0(%arg0: i32, %arg1: i32) -> (i32, i32) {
    %c0_i32 = arith.constant 0 : i32
    %c0_i32_0 = arith.constant 0 : i32
    return %arg0, %c0_i32 : i32, i32
  }
  func.func @transform_1(%arg0: i32, %arg1: i32) -> (i32, i32) {
    %c0_i32 = arith.constant 0 : i32
    %c0_i32_0 = arith.constant 0 : i32
    return %c0_i32, %arg1 : i32, i32
  }
  func.func @transform_2(%arg0: i32, %arg1: i32) -> (i32, i32) {
    %c0_i32 = arith.constant 0 : i32
    %c0_i32_0 = arith.constant 0 : i32
    return %arg0, %c0_i32 : i32, i32
  }
  func.func @transform_3(%arg0: i32, %arg1: i32) -> (i32, i32) {
    %c0_i32 = arith.constant 0 : i32
    return %arg0, %arg1 : i32, i32
  }
  func.func @transform_4(%arg0: i32, %arg1: i32) -> (i32, i32) {
    %c0_i32 = arith.constant 0 : i32
    %c0_i32_0 = arith.constant 0 : i32
    return %arg0, %c0_i32 : i32, i32
  }
}

</mosaic_0001>

<llo_original>
// kernel: tpu_custom_call.1
$region0: #{tpu_custom_call.1}
  #allocation0 [shape = 'u32[]', space=smem, size = 0x4, offset = 0x4, fixed_abs, tag = 'smem constant byte address 0x4 - core index']
  #allocation1 [shape = 'u32[144,128]{1,0:T(1,128)}', space=vmem, size = 0x12000, scoped, tag = 'internal scratch']
  #allocation2 [shape = 'bf16[16,64]{1,0:T(16,128)(2,1)}', space=vmem, size = 0x1000, scoped, tag = 'scratch operand']
  #allocation3 [shape = 'f32[16,1]{1,0:T(8,128)}', space=vmem, size = 0x2000, scoped, tag = 'scratch operand']
  #allocation4 [shape = 'f32[16,1]{1,0:T(8,128)}', space=vmem, size = 0x2000, scoped, tag = 'scratch operand']
  #allocation5 [shape = 'f32[16,1]{1,0:T(8,128)}', space=vmem, size = 0x2000, scoped, tag = 'scratch operand']
  %s0 = inlined_call_operand.vmem [shape: f32[16,64], index: 0, kind: input, shape index: {}]
  %s1 = inlined_call_operand.hbm [shape: f32[64,1024], index: 1, kind: input, shape index: {}]
  %s2 = inlined_call_operand.vmem [shape: s32[16,1], index: 2, kind: input, shape index: {}]
  %s3 = inlined_call_operand.hbm [shape: f32[16,1024], index: 3, kind: output, shape index: {0}]
  %s4 = inlined_call_operand.vmem [shape: f32[16,1], index: 4, kind: output, shape index: {1}]
  %5 = xla_tuple %s3, %s4
  %s6 = sld [smem:[#allocation0]]
  $region65: #{tpu_custom_call.1} parent=0
    _
  %s8 = ssub.s32 1, %s6
  %s9 = scalar_select 0, %s8, %s6
  $region1: #{tpu_custom_call.1} parent=0
    #allocation6 [shape = 'u8[131072]{0}', space=vmem, size = 0x20000, scoped, tag = 'input window, operand 1']
    #allocation7 [shape = 's32[2]{0}', space=sflag, size = 0x8, scoped, tag = 'scoped memory for tpu_custom_call.1']
    #allocation8 [shape = 's32[2]{0}', space=sflag, size = 0x8, scoped, tag = 'scoped memory for tpu_custom_call.1']
    #allocation9 [shape = 'u8[32768]{0}', space=vmem, size = 0x8000, scoped, tag = 'output window, operand 0']
    %10 = vsyncpa [#allocation7], 0
    %s11 = scalar_lea.sflag [#allocation7], 1
    %12 = vsyncpa %s11, 0
    %13 = vsyncpa [#allocation8], 0
    %s14 = scalar_lea.sflag [#allocation8], 1
    %15 = vsyncpa %s14, 0
    loop: start=0, step=1, limit=6
    $region2: #{tpu_custom_call.1} parent=1 // loop_pre_header
      _
    $region3: #{tpu_custom_call.1} parent=1 // loop_header
      %s17 = sphi 0, %s21
      %p18 = scmp.ge.s32.totalorder %s17, 6
      %s24 = sphi 0, %s36
      %s25 = sphi 0, %s32
      %s26 = sphi 0, %s24
      %s27 = sphi 0, %s25
      %s28 = sphi 0, %s26
      %s29 = sphi 0, %s27
      %s39 = sphi 0, %s41
      %s42 = sphi 0, %s39
      %s43 = sphi 0, %s42
      %s59 = sphi 0, %s43
      %s65 = sphi 0, %s67
      %s68 = sphi 0, %s65
      %s69 = sphi 0, %s68
      %s85 = sphi 0, %s69
      %s91 = sphi 0, %s93
      %s94 = sphi 0, %s91
      %s95 = sphi 0, %s94
      %s111 = sphi 0, %s95
      %s119 = sphi 0, %s121
      %s122 = sphi 0, %s119
      %s123 = sphi 0, %s122
      %s139 = sphi 0, %s123
      %s145 = sphi 0, %s147
      %s148 = sphi 0, %s145
      %s149 = sphi 0, %s148
      %s165 = sphi 0, %s149
    $region4: #{tpu_custom_call.1} parent=1 // loop_header_branch
      %20 = sbr.rel (%p18) target = $region8
    $region5: #{tpu_custom_call.1} parent=1 // loop_body
      %s22 = ssub.s32 %s17, 1
      %s23 = ssub.s32 %s17, 2
      %s30 = sadd.s32 1, %s25
      %p31 = scmp.ge.s32.totalorder %s30, 4
      %s32 = scalar_select %p31, 0, %s30
      %s33 = sadd.s32 1, %s24
      %s34 = scalar_select %p31, %s33, %s24
      %p35 = scmp.ge.s32.totalorder %s34, 1
      %s36 = scalar_select %p35, 0, %s34
      %s37 = ssub.s32 %s24, %s36
      %p38 = scmp.eq.s32.totalorder %s37, 0
      %s40 = sadd.s32 %s39, 1
      %s41 = scalar_select %p38, %s39, %s40
      %p44 = pneg %p38
      %p45 = scmp.eq.s32.totalorder %s17, 3
      %p46 = por %p44, %p45
      %p47 = scmp.ne.s32.totalorder %s39, %s42
      %p48 = scmp.eq.s32.totalorder %s17, 0
      %p49 = por %p47, %p48
      %p50 = scmp.ne.s32.totalorder %s39, %s42
      %p51 = scmp.eq.s32.totalorder %s22, 3
      %p52 = por %p50, %p51
      %p53 = scmp.ne.s32.totalorder %s42, %s43
      %p54 = scmp.eq.s32.totalorder %s22, 0
      %p55 = por %p53, %p54
      %p56 = scmp.ne.s32.totalorder %s42, %s43
      %p57 = scmp.eq.s32.totalorder %s23, 3
      %p58 = por %p56, %p57
      %p60 = scmp.ne.s32.totalorder %s43, %s59
      %p61 = scmp.eq.s32.totalorder %s23, 0
      %p62 = por %p60, %p61
      %s63 = ssub.s32 %s25, %s32
      %p64 = scmp.eq.s32.totalorder %s63, 0
      %s66 = sadd.s32 %s65, 1
      %s67 = scalar_select %p64, %s65, %s66
      %p70 = pneg %p64
      %p71 = scmp.eq.s32.totalorder %s17, 3
      %p72 = por %p70, %p71
      %p73 = scmp.ne.s32.totalorder %s65, %s68
      %p74 = scmp.eq.s32.totalorder %s17, 0
      %p75 = por %p73, %p74
      %p76 = scmp.ne.s32.totalorder %s65, %s68
      %p77 = scmp.eq.s32.totalorder %s22, 3
      %p78 = por %p76, %p77
      %p79 = scmp.ne.s32.totalorder %s68, %s69
      %p80 = scmp.eq.s32.totalorder %s22, 0
      %p81 = por %p79, %p80
      %p82 = scmp.ne.s32.totalorder %s68, %s69
      %p83 = scmp.eq.s32.totalorder %s23, 3
      %p84 = por %p82, %p83
      %p86 = scmp.ne.s32.totalorder %s69, %s85
      %p87 = scmp.eq.s32.totalorder %s23, 0
      %p88 = por %p86, %p87
      %s89 = ssub.s32 %s24, %s36
      %p90 = scmp.eq.s32.totalorder %s89, 0
      %s92 = sadd.s32 %s91, 1
      %s93 = scalar_select %p90, %s91, %s92
      %p96 = pneg %p90
      %p97 = scmp.eq.s32.totalorder %s17, 3
      %p98 = por %p96, %p97
      %p99 = scmp.ne.s32.totalorder %s91, %s94
      %p100 = scmp.eq.s32.totalorder %s17, 0
      %p101 = por %p99, %p100
      %p102 = scmp.ne.s32.totalorder %s91, %s94
      %p103 = scmp.eq.s32.totalorder %s22, 3
      %p104 = por %p102, %p103
      %p105 = scmp.ne.s32.totalorder %s94, %s95
      %p106 = scmp.eq.s32.totalorder %s22, 0
      %p107 = por %p105, %p106
      %p108 = scmp.ne.s32.totalorder %s94, %s95
      %p109 = scmp.eq.s32.totalorder %s23, 3
      %p110 = por %p108, %p109
      %p112 = scmp.ne.s32.totalorder %s95, %s111
      %p113 = scmp.eq.s32.totalorder %s23, 0
      %p114 = por %p112, %p113
      %s115 = ssub.s32 %s24, %s36
      %s116 = ssub.s32 %s25, %s32
      %s117 = sor.u32 %s115, %s116
      %p118 = scmp.eq.s32.totalorder %s117, 0
      %s120 = sadd.s32 %s119, 1
      %s121 = scalar_select %p118, %s119, %s120
      %p124 = pneg %p118
      %p125 = scmp.eq.s32.totalorder %s17, 3
      %p126 = por %p124, %p125
      %p127 = scmp.ne.s32.totalorder %s119, %s122
      %p128 = scmp.eq.s32.totalorder %s17, 0
      %p129 = por %p127, %p128
      %p130 = scmp.ne.s32.totalorder %s119, %s122
      %p131 = scmp.eq.s32.totalorder %s22, 3
      %p132 = por %p130, %p131
      %p133 = scmp.ne.s32.totalorder %s122, %s123
      %p134 = scmp.eq.s32.totalorder %s22, 0
      %p135 = por %p133, %p134
      %p136 = scmp.ne.s32.totalorder %s122, %s123
      %p137 = scmp.eq.s32.totalorder %s23, 3
      %p138 = por %p136, %p137
      %p140 = scmp.ne.s32.totalorder %s123, %s139
      %p141 = scmp.eq.s32.totalorder %s23, 0
      %p142 = por %p140, %p141
      %s143 = ssub.s32 %s24, %s36
      %p144 = scmp.eq.s32.totalorder %s143, 0
      %s146 = sadd.s32 %s145, 1
      %s147 = scalar_select %p144, %s145, %s146
      %p150 = pneg %p144
      %p151 = scmp.eq.s32.totalorder %s17, 3
      %p152 = por %p150, %p151
      %p153 = scmp.ne.s32.totalorder %s145, %s148
      %p154 = scmp.eq.s32.totalorder %s17, 0
      %p155 = por %p153, %p154
      %p156 = scmp.ne.s32.totalorder %s145, %s148
      %p157 = scmp.eq.s32.totalorder %s22, 3
      %p158 = por %p156, %p157
      %p159 = scmp.ne.s32.totalorder %s148, %s149
      %p160 = scmp.eq.s32.totalorder %s22, 0
      %p161 = por %p159, %p160
      %p162 = scmp.ne.s32.totalorder %s148, %s149
      %p163 = scmp.eq.s32.totalorder %s23, 3
      %p164 = por %p162, %p163
      %p166 = scmp.ne.s32.totalorder %s149, %s165
      %p167 = scmp.eq.s32.totalorder %s23, 0
      %p168 = por %p166, %p167
      %p169 = scmp.le.s32.totalorder 1, %s17
      %p170 = scmp.lt.s32.totalorder %s17, 5
      %p171 = pnand %p169, %p170
      %p172 = pneg %p171
      // Predicated region
      $region9: #{tpu_custom_call.1} parent=5 // pred_check
        _
      $region10: #{tpu_custom_call.1} parent=5 // pred_check_branch
        %174 = sbr.rel (%p171) target = $region12
      $region11: #{tpu_custom_call.1} parent=5 // pred_region
        %s175 = ssub.s32 %s17, 1
        // Predicated region
        $region13: #{tpu_custom_call.1} parent=11 // pred_check
          %p176 = pneg %p55
        $region14: #{tpu_custom_call.1} parent=11 // pred_check_branch
          %178 = sbr.rel (%p176) target = $region16
        $region15: #{tpu_custom_call.1} parent=11 // pred_region
          %s179 = smul.u32 2, %s26
          %p180 = scmp.lt.s32.totalorder %s179, 1
          %s181 = scalar_select %p180, %s179, 1
          %s182 = smul.addr %s181, 8
          %s183 = scalar_lea.vmem %s0, %s182
          %s184 = smul.u32 2, %s26
        $region16: #{tpu_custom_call.1} parent=11 // pred_fallthru
          _
        // Predicated region
        $region17: #{tpu_custom_call.1} parent=11 // pred_check
          %p185 = pneg %p107
        $region18: #{tpu_custom_call.1} parent=11 // pred_check_branch
          %187 = sbr.rel (%p185) target = $region20
        $region19: #{tpu_custom_call.1} parent=11 // pred_region
          %s188 = smul.u32 2, %s26
          %p189 = scmp.lt.s32.totalorder %s188, 1
          %s190 = scalar_select %p189, %s188, 1
          %s191 = smul.addr %s190, 8
          %s192 = scalar_lea.vmem %s2, %s191
          %s193 = smul.u32 2, %s26
        $region20: #{tpu_custom_call.1} parent=11 // pred_fallthru
          _
      $region12: #{tpu_custom_call.1} parent=5 // pred_fallthru
        _
      %p194 = scmp.lt.s32.totalorder %s17, 4
      // Predicated region
      $region21: #{tpu_custom_call.1} parent=5 // pred_check
        %p195 = pneg %p194
      $region22: #{tpu_custom_call.1} parent=5 // pred_check_branch
        %197 = sbr.rel (%p195) target = $region24
      $region23: #{tpu_custom_call.1} parent=5 // pred_region
        // Predicated region
        $region25: #{tpu_custom_call.1} parent=23 // pred_check
          %p198 = pneg %p75
        $region26: #{tpu_custom_call.1} parent=23 // pred_check_branch
          %200 = sbr.rel (%p198) target = $region28
        $region27: #{tpu_custom_call.1} parent=23 // pred_region
          %s201 = sand.u32 %s65, 1
          %s202 = scalar_lea.sflag [#allocation7], %s201
          %s203 = sand.u32 %s65, 1
          %s204 = smul.addr %s203, 128
          %s205 = scalar_lea.vmem [#allocation6], %s204
          %s206 = smul.u32 2, %s25
          %s208 = ssub.s32 2048, 2048
          %209 = vsyncadd %s202, %s208
          %s210 = smul.addr %s206, 128
          %s211 = scalar_lea.hbm %s1, %s210
          %s212 = sshll.u32 %s205, 4
          %s213 = int_to_ptr.vmem [resolvable:$true] %s212
          %218 = dma.hbm_to_vmem [thread:$0]  %s211, 2048, %s213, %s202, 1024, 256, 16
        $region28: #{tpu_custom_call.1} parent=23 // pred_fallthru
          _
      $region24: #{tpu_custom_call.1} parent=5 // pred_fallthru
        _
      %p219 = scmp.le.s32.totalorder 1, %s17
      %p220 = scmp.lt.s32.totalorder %s17, 5
      %p221 = pnand %p219, %p220
      %p222 = pneg %p221
      // Predicated region
      $region29: #{tpu_custom_call.1} parent=5 // pred_check
        _
      $region30: #{tpu_custom_call.1} parent=5 // pred_check_branch
        %224 = sbr.rel (%p221) target = $region32
      $region31: #{tpu_custom_call.1} parent=5 // pred_region
        %s225 = ssub.s32 %s17, 1
        %s226 = sand.u32 %s68, 1
        %s227 = scalar_lea.sflag [#allocation7], %s226
        %s228 = sand.u32 %s68, 1
        %s229 = smul.addr %s228, 128
        %s230 = scalar_lea.vmem [#allocation6], %s229
        // Predicated region
        $region33: #{tpu_custom_call.1} parent=31 // pred_check
          %p231 = pneg %p81
        $region34: #{tpu_custom_call.1} parent=31 // pred_check_branch
          %233 = sbr.rel (%p231) target = $region36
        $region35: #{tpu_custom_call.1} parent=31 // pred_region
          %234 = dma.done %s227, 2048
        $region36: #{tpu_custom_call.1} parent=31 // pred_fallthru
          _
        %s235 = smul.u32 2, %s26
        %p236 = scmp.lt.s32.totalorder %s235, 1
        %s237 = scalar_select %p236, %s235, 1
        %s238 = smul.addr %s237, 8
        %s239 = scalar_lea.vmem %s0, %s238
        %p240 = pneg %p55
        %p241 = pneg %p52
        %s242 = sand.u32 %s68, 1
        %s243 = scalar_lea.sflag [#allocation7], %s242
        %s244 = sand.u32 %s68, 1
        %s245 = smul.addr %s244, 128
        %s246 = scalar_lea.vmem [#allocation6], %s245
        %p247 = pneg %p81
        %p248 = pneg %p78
        %s249 = smul.u32 2, %s26
        %p250 = scmp.lt.s32.totalorder %s249, 1
        %s251 = scalar_select %p250, %s249, 1
        %s252 = smul.addr %s251, 8
        %s253 = scalar_lea.vmem %s2, %s252
        %p254 = pneg %p107
        %p255 = pneg %p104
        %p256 = pneg %p135
        %p257 = pneg %p132
        %s258 = sand.u32 %s122, 1
        %s259 = scalar_lea.sflag [#allocation8], %s258
        %s260 = sand.u32 %s122, 1
        %s261 = smul.addr %s260, 32
        %s262 = scalar_lea.vmem [#allocation9], %s261
        %p263 = pneg %p161
        %p264 = pneg %p158
        %s265 = smul.u32 2, %s26
        %p266 = scmp.lt.s32.totalorder %s265, 1
        %s267 = scalar_select %p266, %s265, 1
        %s268 = smul.addr %s267, 8
        %s269 = scalar_lea.vmem %s4, %s268
        %s270 = smul.u32 2, %s26
        %p271 = scmp.lt.s32.totalorder %s270, 1
        %s272 = scalar_select %p271, %s270, 1
        %s273 = smul.addr %s272, 8
        %s274 = scalar_lea.vmem %s0, %s273
        %s275 = smul.u32 2, %s26
        %s276 = smul.u32 2, %s27
        %s277 = smul.u32 2, %s26
        %p278 = scmp.lt.s32.totalorder %s277, 1
        %s279 = scalar_select %p278, %s277, 1
        %s280 = smul.addr %s279, 8
        %s281 = scalar_lea.vmem %s2, %s280
        %s282 = smul.u32 2, %s26
        %s283 = smul.u32 2, %s26
        %s284 = smul.u32 2, %s27
        %s285 = smul.u32 2, %s26
        %p286 = scmp.lt.s32.totalorder %s285, 1
        %s287 = scalar_select %p286, %s285, 1
        %s288 = smul.addr %s287, 8
        %s289 = scalar_lea.vmem %s4, %s288
        %s290 = smul.u32 2, %s26
        %p292 = scmp.eq.s32.totalorder %s27, 0
        // Predicated region
        $region37: #{tpu_custom_call.1} parent=31 // pred_check
          %p293 = pneg %p292
        $region38: #{tpu_custom_call.1} parent=31 // pred_check_branch
          %295 = sbr.rel (%p293) target = $region40
        $region39: #{tpu_custom_call.1} parent=31 // pred_region
          %v296 = vld [vmem:[%s274] sm:$0xff]
          %v297 = vld [vmem:[%s274 + $0x8] sm:$0xff]
          %v298 = vmul.f32 %v296, %v296
          %v299 = vmul.f32 %v297, %v297
          %vm300 = vcmask 523264
          %v301 = vsel %vm300, %v298, 0.0
          %302 = vadd.xlane.f32.xlu0 %v301
          %v303 = vpop.xlane.xlu0 %302
          %v304 = vsel %vm300, %v299, 0.0
          %305 = vadd.xlane.f32.xlu0 %v304
          %v306 = vpop.xlane.xlu0 %305
          %v307 = vmax.f32 %v303, 1e-24
          %v308 = vmax.f32 %v306, 1e-24
          %v309 = vrsqrt.pop %v307
          %v310 = vrsqrt.pop %v308
          %v311 = vmul.f32 %v296, %v309
          %v312 = vmul.f32 %v297, %v310
          %v313 = vpack.c.bf16 %v312, %v311
          %314 = vst.msk [vmem:[#allocation2] sm:$0xff] %vm300, %v313
          %vm315 = vcmask 7168
          %316 = vst.msk [vmem:[#allocation3] sm:$0xff] %vm315, -inf
          %317 = vst.msk [vmem:[#allocation3 + $0x8] sm:$0xff] %vm315, -inf
          %318 = vst.msk [vmem:[#allocation4] sm:$0xff] %vm315, 0.0
          %319 = vst.msk [vmem:[#allocation4 + $0x8] sm:$0xff] %vm315, 0.0
          %320 = vst.msk [vmem:[#allocation5] sm:$0xff] %vm315, 0.0
          %321 = vst.msk [vmem:[#allocation5 + $0x8] sm:$0xff] %vm315, 0.0
        $region40: #{tpu_custom_call.1} parent=31 // pred_fallthru
          _
        %v322 = vld [vmem:[%s230] sm:$0xff]
        %v323 = vld [vmem:[%s230 + $0x8] sm:$0xff]
        %v324 = vld [vmem:[%s230 + $0x10] sm:$0xff]
        %v325 = vld [vmem:[%s230 + $0x18] sm:$0xff]
        %v326 = vld [vmem:[%s230 + $0x20] sm:$0xff]
        %v327 = vld [vmem:[%s230 + $0x28] sm:$0xff]
        %v328 = vld [vmem:[%s230 + $0x30] sm:$0xff]
        %v329 = vld [vmem:[%s230 + $0x38] sm:$0xff]
        %v330 = vld [vmem:[%s230 + $0x40] sm:$0xff]
        %v331 = vld [vmem:[%s230 + $0x48] sm:$0xff]
        %v332 = vld [vmem:[%s230 + $0x50] sm:$0xff]
        %v333 = vld [vmem:[%s230 + $0x58] sm:$0xff]
        %v334 = vld [vmem:[%s230 + $0x60] sm:$0xff]
        %v335 = vld [vmem:[%s230 + $0x68] sm:$0xff]
        %v336 = vld [vmem:[%s230 + $0x70] sm:$0xff]
        %v337 = vld [vmem:[%s230 + $0x78] sm:$0xff]
        %v338 = vmul.f32 %v322, %v322
        %v339 = vmul.f32 %v323, %v323
        %v340 = vmul.f32 %v324, %v324
        %v341 = vmul.f32 %v325, %v325
        %v342 = vmul.f32 %v326, %v326
        %v343 = vmul.f32 %v327, %v327
        %v344 = vmul.f32 %v328, %v328
        %v345 = vmul.f32 %v329, %v329
        %v346 = vmul.f32 %v330, %v330
        %v347 = vmul.f32 %v331, %v331
        %v348 = vmul.f32 %v332, %v332
        %v349 = vmul.f32 %v333, %v333
        %v350 = vmul.f32 %v334, %v334
        %v351 = vmul.f32 %v335, %v335
        %v352 = vmul.f32 %v336, %v336
        %v353 = vmul.f32 %v337, %v337
        %v354 = vadd.f32 %v338, %v340
        %v355 = vadd.f32 %v354, %v342
        %v356 = vadd.f32 %v355, %v344
        %v357 = vadd.f32 %v356, %v346
        %v358 = vadd.f32 %v357, %v348
        %v359 = vadd.f32 %v358, %v350
        %v360 = vadd.f32 %v359, %v352
        %v361 = vrot.slane %v360, 4
        %v362 = vadd.f32 %v360, %v361
        %v363 = vrot.slane %v362, 2
        %v364 = vadd.f32 %v362, %v363
        %v365 = vrot.slane %v364, 1
        %v366 = vadd.f32 %v364, %v365
        %v367 = vadd.f32 %v339, %v341
        %v368 = vadd.f32 %v367, %v343
        %v369 = vadd.f32 %v368, %v345
        %v370 = vadd.f32 %v369, %v347
        %v371 = vadd.f32 %v370, %v349
        %v372 = vadd.f32 %v371, %v351
        %v373 = vadd.f32 %v372, %v353
        %v374 = vrot.slane %v373, 4
        %v375 = vadd.f32 %v373, %v374
        %v376 = vrot.slane %v375, 2
        %v377 = vadd.f32 %v375, %v376
        %v378 = vrot.slane %v377, 1
        %v379 = vadd.f32 %v377, %v378
        %v380 = vmax.f32 %v366, 1e-24
        %v381 = vmax.f32 %v379, 1e-24
        %v382 = vrsqrt.pop %v380
        %v383 = vrsqrt.pop %v381
        %v384 = vmul.f32 %v322, %v382
        %v385 = vmul.f32 %v323, %v383
        %v386 = vmul.f32 %v324, %v382
        %v387 = vmul.f32 %v325, %v383
        %v388 = vmul.f32 %v326, %v382
        %v389 = vmul.f32 %v327, %v383
        %v390 = vmul.f32 %v328, %v382
        %v391 = vmul.f32 %v329, %v383
        %v392 = vmul.f32 %v330, %v382
        %v393 = vmul.f32 %v331, %v383
        %v394 = vmul.f32 %v332, %v382
        %v395 = vmul.f32 %v333, %v383
        %v396 = vmul.f32 %v334, %v382
        %v397 = vmul.f32 %v335, %v383
        %v398 = vmul.f32 %v336, %v382
        %v399 = vmul.f32 %v337, %v383
        %v400 = vpack.c.bf16 %v386, %v384
        %v401 = vpack.c.bf16 %v387, %v385
        %v402 = vpack.c.bf16 %v390, %v388
        %v403 = vpack.c.bf16 %v391, %v389
        %v404 = vpack.c.bf16 %v394, %v392
        %v405 = vpack.c.bf16 %v395, %v393
        %v406 = vpack.c.bf16 %v398, %v396
        %v407 = vpack.c.bf16 %v399, %v397
        %v408 = vld [vmem:[#allocation2] sm:$0xff]
        %vm409 = vcmask 523264
        %v411 = vsel %vm409, %v408, 0
        %413 = vmatprep.subr.bf16.mxu0 %v401
        %414 = vmatpush1.bf16.msra.mxu0 %v400
        %415 = vmatprep.subr.bf16.mxu0 %v403
        %416 = vmatpush1.bf16.msra.mxu0 %v402
        %417 = vmatprep.subr.bf16.mxu0 %v405
        %418 = vmatpush1.bf16.msra.mxu0 %v404
        %419 = vmatprep.subr.bf16.mxu0 %v407
        %420 = vmatpush1.bf16.msra.mxu0 %v406
        %421 = vmatprep.subr.bf16.mxu0 0
        %422 = vmatpush1.bf16.msra.mxu0 0
        %423 = vmatprep.subr.bf16.mxu0 0
        %424 = vmatpush1.bf16.msra.mxu0 0
        %425 = vmatprep.subr.bf16.mxu0 0
        %426 = vmatpush1.bf16.msra.mxu0 0
        %427 = vmatprep.subr.bf16.mxu0 0
        %428 = vmatpush1.bf16.msra.mxu0 0
        %429 = vmatprep.subr.bf16.mxu0 0
        %430 = vmatpush1.bf16.msra.mxu0 0
        %431 = vmatprep.subr.bf16.mxu0 0
        %432 = vmatpush1.bf16.msra.mxu0 0
        %433 = vmatprep.subr.bf16.mxu0 0
        %434 = vmatpush1.bf16.msra.mxu0 0
        %435 = vmatprep.subr.bf16.mxu0 0
        %436 = vmatpush1.bf16.msra.mxu0 0
        %437 = vmatprep.subr.bf16.mxu0 0
        %438 = vmatpush1.bf16.msra.mxu0 0
        %439 = vmatprep.subr.bf16.mxu0 0
        %440 = vmatpush1.bf16.msra.mxu0 0
        %441 = vmatprep.subr.bf16.mxu0 0
        %442 = vmatpush1.bf16.msra.mxu0 0
        %443 = vmatprep.subr.bf16.mxu0 0
        %444 = vmatpush1.bf16.msra.mxu0 0
        %445 = vmatprep.mubr.bf16.mxu0 0
        %446 = vmatmul.mubr.bf16.gmra.mrb[0].mxu0 %v411
        %v447 = vpop.f32.mrb[0].mxu0
        %v448 = vadd.f32 0.0, %v447
        %v449 = vpop.f32.mrb[0].mxu0
        %v450 = vadd.f32 0.0, %v449
        %v451 = vpop.f32.mrb[0].mxu0
        %v452 = vadd.f32 0.0, %v451
        %v453 = vpop.f32.mrb[0].mxu0
        %v454 = vadd.f32 0.0, %v453
        %455 = vdwg.mxu0
        %v456 = vmax.f32 %v448, -0.9999999
        %v457 = vmax.f32 %v450, -0.9999999
        %v458 = vmax.f32 %v452, -0.9999999
        %v459 = vmax.f32 %v454, -0.9999999
        %v460 = vmin.f32 %v456, 0.9999999
        %v461 = vmin.f32 %v457, 0.9999999
        %v462 = vmin.f32 %v458, 0.9999999
        %v463 = vmin.f32 %v459, 0.9999999
        %v464 = vand.u32 2147483647, %v460
        %v465 = vand.u32 2147483647, %v461
        %v466 = vand.u32 2147483647, %v462
        %v467 = vand.u32 2147483647, %v463
        %v468 = vmul.f32 %v464, -0.0012624911
        %v469 = vmul.f32 %v465, -0.0012624911
        %v470 = vmul.f32 %v466, -0.0012624911
        %v471 = vmul.f32 %v467, -0.0012624911
        %v472 = vadd.f32 %v468, 0.00667009
        %v473 = vadd.f32 %v469, 0.00667009
        %v474 = vadd.f32 %v470, 0.00667009
        %v475 = vadd.f32 %v471, 0.00667009
        %v476 = vmul.f32 %v472, %v464
        %v477 = vmul.f32 %v473, %v465
        %v478 = vmul.f32 %v474, %v466
        %v479 = vmul.f32 %v475, %v467
        %v480 = vadd.f32 %v476, -0.017088126
        %v481 = vadd.f32 %v477, -0.017088126
        %v482 = vadd.f32 %v478, -0.017088126
        %v483 = vadd.f32 %v479, -0.017088126
        %v484 = vmul.f32 %v480, %v464
        %v485 = vmul.f32 %v481, %v465
        %v486 = vmul.f32 %v482, %v466
        %v487 = vmul.f32 %v483, %v467
        %v488 = vadd.f32 %v484, 0.03089188
        %v489 = vadd.f32 %v485, 0.03089188
        %v490 = vadd.f32 %v486, 0.03089188
        %v491 = vadd.f32 %v487, 0.03089188
        %v492 = vmul.f32 %v488, %v464
        %v493 = vmul.f32 %v489, %v465
        %v494 = vmul.f32 %v490, %v466
        %v495 = vmul.f32 %v491, %v467
        %v496 = vadd.f32 %v492, -0.050174303
        %v497 = vadd.f32 %v493, -0.050174303
        %v498 = vadd.f32 %v494, -0.050174303
        %v499 = vadd.f32 %v495, -0.050174303
        %v500 = vmul.f32 %v496, %v464
        %v501 = vmul.f32 %v497, %v465
        %v502 = vmul.f32 %v498, %v466
        %v503 = vmul.f32 %v499, %v467
        %v504 = vadd.f32 %v500, 0.08897899
        %v505 = vadd.f32 %v501, 0.08897899
        %v506 = vadd.f32 %v502, 0.08897899
        %v507 = vadd.f32 %v503, 0.08897899
        %v508 = vmul.f32 %v504, %v464
        %v509 = vmul.f32 %v505, %v465
        %v510 = vmul.f32 %v506, %v466
        %v511 = vmul.f32 %v507, %v467
        %v512 = vadd.f32 %v508, -0.2145988
        %v513 = vadd.f32 %v509, -0.2145988
        %v514 = vadd.f32 %v510, -0.2145988
        %v515 = vadd.f32 %v511, -0.2145988
        %v516 = vmul.f32 %v512, %v464
        %v517 = vmul.f32 %v513, %v465
        %v518 = vmul.f32 %v514, %v466
        %v519 = vmul.f32 %v515, %v467
        %v520 = vadd.f32 %v516, 1.5707963
        %v521 = vadd.f32 %v517, 1.5707963
        %v522 = vadd.f32 %v518, 1.5707963
        %v523 = vadd.f32 %v519, 1.5707963
        %v524 = vsub.f32 1.0, %v464
        %v525 = vsub.f32 1.0, %v465
        %v526 = vsub.f32 1.0, %v466
        %v527 = vsub.f32 1.0, %v467
        %v528 = vmax.f32 %v524, 0.0
        %v529 = vmax.f32 %v525, 0.0
        %v530 = vmax.f32 %v526, 0.0
        %v531 = vmax.f32 %v527, 0.0
        %v532 = vrsqrt.pop %v528
        %v533 = vmul.f32 %v528, %v532
        %vm534 = vcmp.eq.f32.partialorder %v528, inf
        %v535 = vsel %vm534, %v528, %v533
        %vm536 = vcmp.eq.f32.partialorder %v528, 0.0
        %v537 = vand.u32 %v528, 2147483648
        %v538 = vsel %vm536, %v537, %v535
        %v539 = vrsqrt.pop %v529
        %v540 = vmul.f32 %v529, %v539
        %vm541 = vcmp.eq.f32.partialorder %v529, inf
        %v542 = vsel %vm541, %v529, %v540
        %vm543 = vcmp.eq.f32.partialorder %v529, 0.0
        %v544 = vand.u32 %v529, 2147483648
        %v545 = vsel %vm543, %v544, %v542
        %v546 = vrsqrt.pop %v530
        %v547 = vmul.f32 %v530, %v546
        %vm548 = vcmp.eq.f32.partialorder %v530, inf
        %v549 = vsel %vm548, %v530, %v547
        %vm550 = vcmp.eq.f32.partialorder %v530, 0.0
        %v551 = vand.u32 %v530, 2147483648
        %v552 = vsel %vm550, %v551, %v549
        %v553 = vrsqrt.pop %v531
        %v554 = vmul.f32 %v531, %v553
        %vm555 = vcmp.eq.f32.partialorder %v531, inf
        %v556 = vsel %vm555, %v531, %v554
        %vm557 = vcmp.eq.f32.partialorder %v531, 0.0
        %v558 = vand.u32 %v531, 2147483648
        %v559 = vsel %vm557, %v558, %v556
        %v560 = vmul.f32 %v538, %v520
        %v561 = vmul.f32 %v545, %v521
        %v562 = vmul.f32 %v552, %v522
        %v563 = vmul.f32 %v559, %v523
        %vm564 = vcmp.lt.f32.partialorder %v460, 0.0
        %vm565 = vcmp.lt.f32.partialorder %v461, 0.0
        %vm566 = vcmp.lt.f32.partialorder %v462, 0.0
        %vm567 = vcmp.lt.f32.partialorder %v463, 0.0
        %v568 = vsub.f32 3.1415927, %v560
        %v569 = vsub.f32 3.1415927, %v561
        %v570 = vsub.f32 3.1415927, %v562
        %v571 = vsub.f32 3.1415927, %v563
        %v572 = vsel %vm564, %v568, %v560
        %v573 = vsel %vm565, %v569, %v561
        %v574 = vsel %vm566, %v570, %v562
        %v575 = vsel %vm567, %v571, %v563
        %s576 = smul.u32 %s27, 256
        %v577 = vlaneseq
        %v578 = vand.u32 %v577, 127
        %v579 = vadd.s32 %v578, 128
        %v580 = vstv %s576
        %v581 = vadd.s32 %v580, %v578
        %v582 = vadd.s32 %v580, %v579
        %v583 = vld [vmem:[%s281] sm:$0xff]
        %v584 = vld [vmem:[%s281 + $0x8] sm:$0xff]
        %585 = vset.pattern.permute.xlu0 0
        %586 = vperm.xlu0 %585, %v583
        %v587 = vpop.permute.xlu0 %586
        %588 = vset.pattern.permute.xlu0 0
        %589 = vperm.xlu0 %588, %v584
        %v590 = vpop.permute.xlu0 %589
        %vm591 = vcmp.eq.s32.totalorder %v581, %v587
        %vm592 = vcmp.eq.s32.totalorder %v582, %v587
        %vm593 = vcmp.eq.s32.totalorder %v581, %v590
        %vm594 = vcmp.eq.s32.totalorder %v582, %v590
        %vm595 = vcmp.lt.s32.totalorder %v581, 1000
        %vm596 = vcmp.lt.s32.totalorder %v582, 1000
        %v597 = vsub.f32 6.2831855, %v572
        %v598 = vsub.f32 6.2831855, %v573
        %v599 = vsub.f32 6.2831855, %v574
        %v600 = vsub.f32 6.2831855, %v575
        %v601 = vmul.f32 %v597, 0.2
        %v602 = vmul.f32 %v598, 0.2
        %v603 = vmul.f32 %v599, 0.2
        %v604 = vmul.f32 %v600, 0.2
        %v605 = vmul.f32 %v601, %v597
        %v606 = vmul.f32 %v602, %v598
        %v607 = vmul.f32 %v603, %v599
        %v608 = vmul.f32 %v604, %v600
        %v609 = vmul.f32 %v597, 0.16
        %v610 = vmul.f32 %v598, 0.16
        %v611 = vmul.f32 %v599, 0.16
        %v612 = vmul.f32 %v600, 0.16
        %v613 = vsub.f32 0.032, %v609
        %v614 = vsub.f32 0.032, %v610
        %v615 = vsub.f32 0.032, %v611
        %v616 = vsub.f32 0.032, %v612
        %v617 = vsel %vm591, %v613, 0.0
        %v618 = vsel %vm592, %v614, 0.0
        %v619 = vsel %vm593, %v615, 0.0
        %v620 = vsel %vm594, %v616, 0.0
        %v621 = vadd.f32 %v605, %v617
        %v622 = vadd.f32 %v606, %v618
        %v623 = vadd.f32 %v607, %v619
        %v624 = vadd.f32 %v608, %v620
        %625 = vst [vmem:[%s262] sm:$0xff] %v621
        %626 = vst [vmem:[%s262 + $0x8] sm:$0xff] %v622
        %627 = vst [vmem:[%s262 + $0x10] sm:$0xff] %v623
        %628 = vst [vmem:[%s262 + $0x18] sm:$0xff] %v624
        %v629 = vsel %vm595, %v621, -1e+30
        %v630 = vsel %vm596, %v622, -1e+30
        %v631 = vsel %vm595, %v623, -1e+30
        %v632 = vsel %vm596, %v624, -1e+30
        %v633 = vmax.f32 %v629, %v630
        %634 = vmax.xlane.f32.xlu0 %v633
        %v635 = vpop.xlane.xlu0 %634
        %v636 = vmax.f32 %v631, %v632
        %637 = vmax.xlane.f32.xlu0 %v636
        %v638 = vpop.xlane.xlu0 %637
        %v639 = vld [vmem:[#allocation3] sm:$0xff]
        %v640 = vld [vmem:[#allocation3 + $0x8] sm:$0xff]
        %v641 = vmax.f32 %v639, %v635
        %v642 = vmax.f32 %v640, %v638
        %v643 = vld [vmem:[#allocation4] sm:$0xff]
        %v644 = vld [vmem:[#allocation4 + $0x8] sm:$0xff]
        %v645 = vsub.f32 %v639, %v641
        %v646 = vsub.f32 %v640, %v642
        %v647 = vmul.f32 %v645, 1.442695
        %v648 = vpow.pop %v647
        %v649 = vmul.f32 %v646, 1.442695
        %v650 = vpow.pop %v649
        %v651 = vmul.f32 %v643, %v648
        %v652 = vmul.f32 %v644, %v650
        %654 = vset.pattern.permute.xlu0 0
        %655 = vperm.xlu0 %654, %v641
        %v656 = vpop.permute.xlu0 %655
        %659 = vset.pattern.permute.xlu0 0
        %660 = vperm.xlu0 %659, %v642
        %v661 = vpop.permute.xlu0 %660
        %v663 = vsub.f32 %v629, %v656
        %v664 = vsub.f32 %v630, %v656
        %v665 = vsub.f32 %v631, %v661
        %v666 = vsub.f32 %v632, %v661
        %v667 = vmul.f32 %v663, 1.442695
        %v668 = vpow.pop %v667
        %v669 = vmul.f32 %v664, 1.442695
        %v670 = vpow.pop %v669
        %v671 = vmul.f32 %v665, 1.442695
        %v672 = vpow.pop %v671
        %v673 = vmul.f32 %v666, 1.442695
        %v674 = vpow.pop %v673
        %v675 = vadd.f32 %v668, %v670
        %676 = vadd.xlane.f32.xlu0 %v675
        %v677 = vpop.xlane.xlu0 %676
        %v678 = vadd.f32 %v672, %v674
        %679 = vadd.xlane.f32.xlu0 %v678
        %v680 = vpop.xlane.xlu0 %679
        %v681 = vadd.f32 %v651, %v677
        %v682 = vadd.f32 %v652, %v680
        %vm683 = vcmask 7168
        %684 = vst.msk [vmem:[#allocation4] sm:$0xff] %vm683, %v681
        %685 = vst.msk [vmem:[#allocation4 + $0x8] sm:$0xff] %vm683, %v682
        %686 = vst.msk [vmem:[#allocation3] sm:$0xff] %vm683, %v641
        %687 = vst.msk [vmem:[#allocation3 + $0x8] sm:$0xff] %vm683, %v642
        %v688 = vld [vmem:[#allocation5] sm:$0xff]
        %v689 = vld [vmem:[#allocation5 + $0x8] sm:$0xff]
        %v690 = vsel %vm591, %v621, 0.0
        %v691 = vsel %vm592, %v622, 0.0
        %v692 = vsel %vm593, %v623, 0.0
        %v693 = vsel %vm594, %v624, 0.0
        %v694 = vadd.f32 %v690, %v691
        %695 = vadd.xlane.f32.xlu0 %v694
        %v696 = vpop.xlane.xlu0 %695
        %v697 = vadd.f32 %v692, %v693
        %698 = vadd.xlane.f32.xlu0 %v697
        %v699 = vpop.xlane.xlu0 %698
        %v700 = vadd.f32 %v688, %v696
        %v701 = vadd.f32 %v689, %v699
        %702 = vst.msk [vmem:[#allocation5] sm:$0xff] %vm683, %v700
        %703 = vst.msk [vmem:[#allocation5 + $0x8] sm:$0xff] %vm683, %v701
        %p704 = scmp.eq.s32.totalorder %s27, 3
        // Predicated region
        $region41: #{tpu_custom_call.1} parent=31 // pred_check
          %p705 = pneg %p704
        $region42: #{tpu_custom_call.1} parent=31 // pred_check_branch
          %707 = sbr.rel (%p705) target = $region44
        $region43: #{tpu_custom_call.1} parent=31 // pred_region
          %v708 = vld [vmem:[#allocation3] sm:$0xff]
          %v709 = vld [vmem:[#allocation3 + $0x8] sm:$0xff]
          %v710 = vld [vmem:[#allocation4] sm:$0xff]
          %v711 = vld [vmem:[#allocation4 + $0x8] sm:$0xff]
          %v712 = vlog2.pop %v710
          %v713 = vmul.f32 %v712, 0.6931472
          %v714 = vlog2.pop %v711
          %v715 = vmul.f32 %v714, 0.6931472
          %v716 = vadd.f32 %v708, %v713
          %v717 = vadd.f32 %v709, %v715
          %s718 = smul.u32 %s26, 16
          %v719 = vlaneseq
          %v720 = vshrl.u32 %v719, 7
          %v721 = vadd.s32 %v720, 8
          %v722 = vstv %s718
          %v723 = vadd.s32 %v722, %v720
          %v724 = vadd.s32 %v722, %v721
          %vm725 = vcmp.lt.s32.totalorder %v723, 16
          %vm726 = vcmp.lt.s32.totalorder %v724, 16
          %v727 = vld [vmem:[#allocation5] sm:$0xff]
          %v728 = vld [vmem:[#allocation5 + $0x8] sm:$0xff]
          %v729 = vsub.f32 %v716, %v727
          %v730 = vsub.f32 %v717, %v728
          %v731 = vsel %vm725, %v729, 0.0
          %v732 = vsel %vm726, %v730, 0.0
          %733 = vst.msk [vmem:[%s289] sm:$0xff] %vm683, %v731
          %734 = vst.msk [vmem:[%s289 + $0x8] sm:$0xff] %vm683, %v732
        $region44: #{tpu_custom_call.1} parent=31 // pred_fallthru
          _
        %s735 = sand.u32 %s122, 1
        %s736 = scalar_lea.sflag [#allocation8], %s735
        %s737 = sand.u32 %s122, 1
        %s738 = smul.addr %s737, 32
        %s739 = scalar_lea.vmem [#allocation9], %s738
        %s740 = smul.u32 2, %s26
        %p741 = scmp.lt.s32.totalorder %s740, 1
        %s742 = scalar_select %p741, %s740, 1
        %s743 = smul.addr %s742, 8
        %s744 = scalar_lea.vmem %s4, %s743
        // Predicated region
        $region45: #{tpu_custom_call.1} parent=31 // pred_check
          %p745 = pneg %p132
        $region46: #{tpu_custom_call.1} parent=31 // pred_check_branch
          %747 = sbr.rel (%p745) target = $region48
        $region47: #{tpu_custom_call.1} parent=31 // pred_region
          %s748 = smul.u32 2, %s26
          %s749 = smul.u32 2, %s27
          %s751 = ssub.s32 512, 512
          %752 = vsyncadd %s736, %s751
          %s753 = smul.addr %s748, 8
          %s754 = sadd.s32 %s749, %s753
          %s755 = smul.addr %s754, 128
          %s756 = scalar_lea.hbm %s3, %s755
          %s757 = sshll.u32 %s739, 4
          %s758 = int_to_ptr.vmem [resolvable:$true] %s757
          %763 = dma.vmem_to_hbm [thread:$0]  %s758, 512, %s756, %s736, 256, 1024, 16
        $region48: #{tpu_custom_call.1} parent=31 // pred_fallthru
          _
        // Predicated region
        $region49: #{tpu_custom_call.1} parent=31 // pred_check
          %p764 = pneg %p158
        $region50: #{tpu_custom_call.1} parent=31 // pred_check_branch
          %766 = sbr.rel (%p764) target = $region52
        $region51: #{tpu_custom_call.1} parent=31 // pred_region
          %s767 = smul.u32 2, %s26
        $region52: #{tpu_custom_call.1} parent=31 // pred_fallthru
          _
        // Predicated region
        $region53: #{tpu_custom_call.1} parent=31 // pred_check
          %p768 = pneg %p158
        $region54: #{tpu_custom_call.1} parent=31 // pred_check_branch
          %770 = sbr.rel (%p768) target = $region56
        $region55: #{tpu_custom_call.1} parent=31 // pred_region
          %s771 = smul.u32 2, %s26
          %p772 = scmp.lt.s32.totalorder %s771, 1
          %s773 = scalar_select %p772, %s771, 1
          %s774 = smul.addr %s773, 8
          %s775 = scalar_lea.vmem %s4, %s774
        $region56: #{tpu_custom_call.1} parent=31 // pred_fallthru
          _
      $region32: #{tpu_custom_call.1} parent=5 // pred_fallthru
        _
      %p776 = scmp.le.s32.totalorder 2, %s17
      // Predicated region
      $region57: #{tpu_custom_call.1} parent=5 // pred_check
        %p777 = pneg %p776
      $region58: #{tpu_custom_call.1} parent=5 // pred_check_branch
        %779 = sbr.rel (%p777) target = $region60
      $region59: #{tpu_custom_call.1} parent=5 // pred_region
        %s780 = ssub.s32 %s17, 2
        // Predicated region
        $region61: #{tpu_custom_call.1} parent=59 // pred_check
          %p781 = pneg %p138
        $region62: #{tpu_custom_call.1} parent=59 // pred_check_branch
          %783 = sbr.rel (%p781) target = $region64
        $region63: #{tpu_custom_call.1} parent=59 // pred_region
          %s784 = sand.u32 %s123, 1
          %s785 = scalar_lea.sflag [#allocation8], %s784
          %s786 = sand.u32 %s123, 1
          %s787 = smul.addr %s786, 32
          %s788 = scalar_lea.vmem [#allocation9], %s787
          %789 = dma.done %s785, 512
        $region64: #{tpu_custom_call.1} parent=59 // pred_fallthru
          _
      $region60: #{tpu_custom_call.1} parent=5 // pred_fallthru
        _
    $region6: #{tpu_custom_call.1} parent=1 // loop_footer
      %s21 = sadd.s32 1, %s17
    $region7: #{tpu_custom_call.1} parent=1 // loop_footer_branch
      %16 = sbr.rel target = $region3
    $region8: #{tpu_custom_call.1} parent=1 // loop_exit
      _
    %790 = vsyncpa [#allocation7], 1
    %s791 = scalar_lea.sflag [#allocation7], 1
    %792 = vsyncpa %s791, 1
    %793 = vsyncpa [#allocation8], 1
    %s794 = scalar_lea.sflag [#allocation8], 1
    %795 = vsyncpa %s794, 1

</llo_original>
